<compile_context>
chip_gen: v7x
topology: tpu7x:2x2x1
jax: 0.10.0
libtpu: 0.0.40
codegen_flags: <defaults>
</compile_context>

<pallas_src>
import jax
import jax.numpy as jnp
from jax.experimental import pallas as pl
from jax.experimental.pallas import tpu as pltpu


def _copy_kernel(x_ref, o_ref):
    # Identity copy of one VMEM tile — this is the whole forward pass.
    o_ref[...] = x_ref[...]


_LANE_CANDIDATES = (2048, 1024, 512, 256, 128)  # widest unmasked-vst lane width
_SMALL_BYTES = 256 * 1024        # below this, pallas_call launch overhead dominates
_SPLIT_BYTES = 2 * 1024 * 1024   # above this, force >= 4 grid steps for DMA overlap

_HW_BUDGET_CACHE = None


def _hw_budget():
    """Returns (max_block_bytes, vmem_limit_bytes), parameterized by TPU gen."""
    global _HW_BUDGET_CACHE
    if _HW_BUDGET_CACHE is None:
        try:
            vmem_cap = int(pltpu.get_tpu_info().vmem_capacity_bytes)
        except Exception:
            vmem_cap = 64 * 1024 * 1024  # conservative: v7x per-TC VMEM
        # in + out operands, each double-buffered -> 4 block-sized buffers live.
        max_block = min(16 * 1024 * 1024, max(4 * 1024 * 1024, vmem_cap // 8))
        vmem_limit = min(4 * max_block + 8 * 1024 * 1024, (vmem_cap * 3) // 4)
        _HW_BUDGET_CACHE = (max_block, int(vmem_limit))
    return _HW_BUDGET_CACHE


def _round_up(a, b):
    return ((a + b - 1) // b) * b


def pallas_reshape(x, shape, *, min_kernel_bytes=_SMALL_BYTES, donate_input=False):
    """Reproduces torch.Tensor.reshape(*shape) semantics (supports -1)."""
    target_shape = tuple(shape)

    dtype = x.dtype
    itemsize = jnp.dtype(dtype).itemsize
    n = int(x.size)
    total_bytes = n * itemsize

    # Reshape is metadata-only; for tiny tensors (or dtypes the tiling math
    # does not cover) the zero-HBM-traffic answer is strictly better.
    if n == 0 or total_bytes < min_kernel_bytes or itemsize not in (1, 2, 4):
        return jnp.reshape(x, target_shape)

    flat = jnp.reshape(x, (-1,))             # row-major flatten (metadata only)

    # Widest lane width that divides n exactly -> unmasked wide vst and long
    # contiguous DMA descriptors, with no padding round trips.
    lane = next((c for c in _LANE_CANDIDATES if n % c == 0), None)
    if lane is None:
        # Ragged element count: any copy formulation needs a pad +
        # trailing-slice round trip (~3x HBM traffic); metadata reshape wins.
        return jnp.reshape(x, target_shape)

    rows = n // lane
    x2d = flat.reshape(rows, lane)

    # Native packed sublane multiple: 8 (f32), 16 (bf16), 32 (int8/fp8).
    sub = max(8, 256 // (itemsize * 8))
    max_block_bytes, vmem_limit = _hw_budget()

    if total_bytes <= _SPLIT_BYTES or rows <= sub:
        # Small enough that pipelining buys nothing: one full-array block
        # (block_shape == full array dims is always legal).
        block_rows = rows
        grid = (1,)
    else:
        bytes_per_row = lane * itemsize
        max_block_rows = max(sub, (max_block_bytes // bytes_per_row) // sub * sub)
        # At least 4 grid steps so the inbound DMA of block i+1 overlaps the
        # outbound DMA of block i (software pipelining of a pure copy).
        target_rows = max(sub, _round_up(pl.cdiv(rows, 4), sub))
        block_rows = min(max_block_rows, target_rows)
        grid = (pl.cdiv(rows, block_rows),)  # partial last block is masked

    call_kwargs = {}
    if donate_input:
        # Output aliases the input buffer: halves peak HBM footprint, but the
        # caller must not reuse `x` afterwards (JAX donation semantics).
        call_kwargs["input_output_aliases"] = {0: 0}

    out2d = pl.pallas_call(
        _copy_kernel,
        out_shape=jax.ShapeDtypeStruct((rows, lane), dtype),
        grid=grid,
        in_specs=[pl.BlockSpec((block_rows, lane), lambda i: (i, 0))],
        out_specs=pl.BlockSpec((block_rows, lane), lambda i: (i, 0)),
        compiler_params=pltpu.CompilerParams(
            # No-op on single-TC v5e/v6e; shards the copy over both TCs on v7x.
            dimension_semantics=("parallel",),
            vmem_limit_bytes=vmem_limit),
        cost_estimate=pl.CostEstimate(
            flops=0, transcendentals=0, bytes_accessed=2 * total_bytes),
        **call_kwargs,
    )(x2d)

    return jnp.reshape(out2d, target_shape)  # handles -1 like torch


if __name__ == "__main__":
    key = jax.random.PRNGKey(0)
    k1, k2, k3, k4 = jax.random.split(key, 4)

    # 1) Module-sized input (NCHW conv feature map), Reshape((2, -1)).
    #    Small -> takes the metadata-only fast path by default.
    x = jax.random.normal(k1, (2, 4, 16, 16), dtype=jnp.float32)
    y = pallas_reshape(x, (2, -1))
    jax.block_until_ready(y)
    ref = jnp.reshape(x, (2, -1))
    assert y.shape == ref.shape and y.dtype == ref.dtype
    assert bool(jnp.all(y == ref))

    # 2) Same input forced through the Pallas kernel path (single block).
    y_k = pallas_reshape(x, (2, -1), min_kernel_bytes=0)
    jax.block_until_ready(y_k)
    assert bool(jnp.all(y_k == ref))

    # 3) 4 MiB input -> multi-block pipelined kernel path (grid of 4 steps).
    xb = jax.random.normal(k2, (8, 4, 256, 128), dtype=jnp.float32)
    yb = pallas_reshape(xb, (-1, 512))
    jax.block_until_ready(yb)
    assert bool(jnp.all(yb == jnp.reshape(xb, (-1, 512))))

    # 4) Ragged element count -> zero-traffic metadata reshape path.
    xr = jax.random.normal(k3, (3, 5, 7), dtype=jnp.float32)
    yr = pallas_reshape(xr, (7, 15))
    jax.block_until_ready(yr)
    assert bool(jnp.all(yr == jnp.reshape(xr, (7, 15))))

    # 5) bf16 input through the kernel path (dtype-aware sublane handling).
    xh = jax.random.normal(k4, (2, 8, 32)).astype(jnp.bfloat16)
    yh = pallas_reshape(xh, (-1, 64), min_kernel_bytes=0)
    jax.block_until_ready(yh)
    assert bool(jnp.all(yh == jnp.reshape(xh, (-1, 64))))

    print("KERNEL_OK")
</pallas_src>

<mosaic_0001>
module attributes {stable_mosaic.version = 11 : i64} {
  func.func @_copy_kernel(%arg0: i32, %arg1: memref<1x2048xf32, #tpu.memory_space<vmem>>, %arg2: memref<1x2048xf32, #tpu.memory_space<vmem>>) attributes {dimension_semantics = [#tpu.dimension_semantics<parallel>], iteration_bounds = array<i64: 1>, scalar_prefetch = 0 : i64, scratch_operands = 0 : i64, tpu.core_type = #tpu.core_type<tc>, window_params = [{transform_indices = @transform_0, window_bounds = array<i64: 1, 2048>}, {transform_indices = @transform_1, window_bounds = array<i64: 1, 2048>}]} {
    %c0 = arith.constant 0 : index
    %c0_0 = arith.constant 0 : index
    %0 = vector.load %arg1[%c0, %c0_0] : memref<1x2048xf32, #tpu.memory_space<vmem>>, vector<1x2048xf32>
    %c0_1 = arith.constant 0 : index
    %c0_2 = arith.constant 0 : index
    %1 = vector.load %arg2[%c0_1, %c0_2] : memref<1x2048xf32, #tpu.memory_space<vmem>>, vector<1x2048xf32>
    tpu.vector_store %arg2[%c0_1, %c0_2], %0 {strides = array<i32>} : memref<1x2048xf32, #tpu.memory_space<vmem>>, vector<1x2048xf32>,
    return
  }
  func.func @transform_0(%arg0: i32) -> (i32, i32) {
    %c0_i32 = arith.constant 0 : i32
    %c0_i32_0 = arith.constant 0 : i32
    return %arg0, %c0_i32 : i32, i32
  }
  func.func @transform_1(%arg0: i32) -> (i32, i32) {
    %c0_i32 = arith.constant 0 : i32
    %c0_i32_0 = arith.constant 0 : i32
    return %arg0, %c0_i32 : i32, i32
  }
}

</mosaic_0001>

<llo_original>
// kernel: tpu_custom_call.1
$region0: #{tpu_custom_call.1}
  #allocation0 [shape = 'u32[]', space=smem, size = 0x4, offset = 0x4, fixed_abs, tag = 'smem constant byte address 0x4 - core index']
  #allocation1 [shape = 'u32[144,128]{1,0:T(1,128)}', space=vmem, size = 0x12000, scoped, tag = 'internal scratch']
  %s0 = inlined_call_operand.hbm [shape: f32[1,2048], index: 0, kind: input, shape index: {}]
  %s1 = inlined_call_operand.hbm [shape: f32[1,2048], index: 1, kind: output, shape index: {}]
  %s2 = sld [smem:[#allocation0]]
  $region18: #{tpu_custom_call.1} parent=0
    _
  %s4 = ssub.s32 1, %s2
  %s5 = scalar_select 0, %s4, %s2
  $region1: #{tpu_custom_call.1} parent=0
    #allocation2 [shape = 'u8[8192]{0}', space=vmem, size = 0x2000, scoped, tag = 'input window, operand 0, single buffered']
    #allocation3 [shape = 's32[1]{0}', space=sflag, size = 0x4, scoped, tag = 'scoped memory for tpu_custom_call.1']
    #allocation4 [shape = 's32[1]{0}', space=sflag, size = 0x4, scoped, tag = 'scoped memory for tpu_custom_call.1']
    #allocation5 [shape = 'u8[8192]{0}', space=vmem, size = 0x2000, scoped, tag = 'output window, operand 0, single buffered']
    %6 = vsyncpa [#allocation3], 0
    %7 = vsyncpa [#allocation4], 0
    // Predicated region
    $region2: #{tpu_custom_call.1} parent=1 // pred_check
      _
    $region3: #{tpu_custom_call.1} parent=1 // pred_check_branch
      %9 = sbr.rel (0) target = $region5
    $region4: #{tpu_custom_call.1} parent=1 // pred_region
      %s11 = ssub.s32 256, 256
      %12 = vsyncadd [#allocation3], %s11
      %s14 = sshll.u32 [#allocation2], 4
      %s15 = int_to_ptr.vmem [resolvable:$true] %s14
      %17 = dma.hbm_to_vmem [thread:$0]  %s0, 256, %s15, [#allocation3]
    $region5: #{tpu_custom_call.1} parent=1 // pred_fallthru
      _
    // Predicated region
    $region6: #{tpu_custom_call.1} parent=1 // pred_check
      _
    $region7: #{tpu_custom_call.1} parent=1 // pred_check_branch
      %19 = sbr.rel (0) target = $region9
    $region8: #{tpu_custom_call.1} parent=1 // pred_region
      %20 = dma.done [#allocation3], 256
    $region9: #{tpu_custom_call.1} parent=1 // pred_fallthru
      _
    %v21 = vld [vmem:[#allocation2] sm:$0xff]
    %v22 = vld [vmem:[#allocation2 + $0x8] sm:$0xff]
    %23 = vst [vmem:[#allocation5] sm:$0xff] %v21
    %24 = vst [vmem:[#allocation5 + $0x8] sm:$0xff] %v22
    // Predicated region
    $region10: #{tpu_custom_call.1} parent=1 // pred_check
      _
    $region11: #{tpu_custom_call.1} parent=1 // pred_check_branch
      %26 = sbr.rel (0) target = $region13
    $region12: #{tpu_custom_call.1} parent=1 // pred_region
      %s28 = ssub.s32 256, 256
      %29 = vsyncadd [#allocation4], %s28
      %s31 = sshll.u32 [#allocation5], 4
      %s32 = int_to_ptr.vmem [resolvable:$true] %s31
      %34 = dma.vmem_to_hbm [thread:$0]  %s32, 256, %s1, [#allocation4]
    $region13: #{tpu_custom_call.1} parent=1 // pred_fallthru
      _
    // Predicated region
    $region14: #{tpu_custom_call.1} parent=1 // pred_check
      _
    $region15: #{tpu_custom_call.1} parent=1 // pred_check_branch
      %36 = sbr.rel (0) target = $region17
    $region16: #{tpu_custom_call.1} parent=1 // pred_region
      %37 = dma.done [#allocation4], 256
    $region17: #{tpu_custom_call.1} parent=1 // pred_fallthru
      _
    %38 = vsyncpa [#allocation3], 1
    %39 = vsyncpa [#allocation4], 1

</llo_original>
